<compile_context>
chip_gen: v7x
topology: tpu7x:2x2x1
jax: 0.10.0
libtpu: 0.0.40
codegen_flags: <defaults>
</compile_context>

<pallas_src>
import math
import functools

import jax
import jax.numpy as jnp
from jax import lax
from jax.experimental import pallas as pl
from jax.experimental.pallas import tpu as pltpu


# --------------------------------------------------------------------------- #
# Fast path: whole table resident in VMEM, in-VMEM row gather.
# --------------------------------------------------------------------------- #
def _vmem_gather_kernel(tok_ref, emb_ref, out_ref, *, tile_n, scale):
    """tok_ref: SMEM (n_pad,) int32 (scalar prefetch, pre-clamped)
       emb_ref: VMEM (V, D) resident table (index_map -> (0, 0) every step)
       out_ref: VMEM (tile_n, D) output tile."""
    base = pl.program_id(0) * tile_n
    unroll = True if tile_n <= 32 else 8

    def gather_row(j, carry):
        tok = tok_ref[base + j]                       # SMEM scalar read
        row = emb_ref[pl.ds(tok, 1), :]               # (1, D) dynamic-row load
        out_ref[pl.ds(j, 1), :] = (row.astype(jnp.float32) * scale).astype(
            out_ref.dtype)
        return carry

    lax.fori_loop(0, tile_n, gather_row, 0, unroll=unroll)


# --------------------------------------------------------------------------- #
# Large-vocab path: HBM row gather with aggregate wait + 1-tile-ahead prefetch.
# --------------------------------------------------------------------------- #
def _dma_gather_kernel(tok_ref, emb_hbm, out_ref, buf, sems, *, tile_n, scale):
    """tok_ref: SMEM (n_pad,) int32 (scalar prefetch, pre-clamped)
       emb_hbm: HBM (V, D) embedding table (memory_space=pl.ANY)
       out_ref: VMEM (tile_n, D) output tile
       buf    : VMEM (2, tile_n, D) double-buffered landing slab
       sems   : DMA semaphores (2,) -- one per slot, aggregate byte count."""
    i = pl.program_id(0)
    nsteps = pl.num_programs(0)
    unroll = True if tile_n <= 32 else 8

    def issue_tile(tile_idx, slot):
        base = tile_idx * tile_n

        def issue(j, carry):
            # All rows of this tile signal the SAME semaphore (aggregate wait).
            pltpu.make_async_copy(
                emb_hbm.at[tok_ref[base + j]],   # (D,) row in HBM
                buf.at[slot, j],                 # (D,) landing row in VMEM
                sems.at[slot],
            ).start()
            return carry

        lax.fori_loop(0, tile_n, issue, 0, unroll=unroll)

    # Prime the pipeline on the first grid step.
    @pl.when(i == 0)
    def _prime():
        issue_tile(0, 0)

    # Prefetch next tile's rows into the other slot BEFORE waiting on this one.
    @pl.when(i + 1 < nsteps)
    def _prefetch_next():
        issue_tile(i + 1, (i + 1) % 2)

    slot = i % 2
    # Single aggregate wait: one descriptor covering the whole (tile_n, D) slab
    # waits for the cumulative bytes of the tile_n row copies issued above.
    pltpu.make_async_copy(
        emb_hbm.at[pl.ds(0, tile_n)], buf.at[slot], sems.at[slot]
    ).wait()

    # f32 scale (parity with the PyTorch reference even for bf16 tables).
    out_ref[...] = (buf[slot].astype(jnp.float32) * scale).astype(out_ref.dtype)


# --------------------------------------------------------------------------- #
# Wrapper
# --------------------------------------------------------------------------- #
def token_embedding(tokens, embedding, *, tile_n=256, gather_mode="auto",
                    vmem_table_budget_bytes=4 << 20):
    """tokens: int array (any shape); embedding: (vocab, emb) table.
    Returns tokens.shape + (emb,) = embedding[tokens] * sqrt(emb)."""
    vocab, emb_size = embedding.shape
    scale = float(math.sqrt(emb_size))
    orig_shape = tokens.shape
    itemsize = jnp.dtype(embedding.dtype).itemsize

    tok_flat = tokens.reshape(-1).astype(jnp.int32)
    # Hoisted, vectorized clamp (DMAs / VMEM loads are not bounds-checked).
    tok_flat = jnp.clip(tok_flat, 0, vocab - 1)
    n = tok_flat.shape[0]

    table_bytes = vocab * emb_size * itemsize
    if gather_mode == "auto":
        gather_mode = "vmem" if table_bytes <= vmem_table_budget_bytes else "dma"

    # Token-tile size: power of two >= 8 (sublane aligned), shrunk to stay
    # within a v7x-safe (~40 MiB) VMEM budget for the double-buffered slabs.
    tn = int(min(tile_n, pl.next_power_of_2(max(n, 8))))
    tn = max(tn, 8)
    vmem_budget = 40 << 20
    while tn > 8 and 4 * tn * emb_size * itemsize > vmem_budget:
        tn //= 2
    if gather_mode == "dma":
        # The aggregate-wait descriptor slices tile_n rows of the table.
        while tn > 8 and tn > vocab:
            tn //= 2

    n_pad = pl.cdiv(n, tn) * tn
    if n_pad != n:
        # Padded ids = 0 -> gather row 0; those rows are sliced off below.
        tok_flat = jnp.pad(tok_flat, (0, n_pad - n))
    grid = (n_pad // tn,)

    out_shape = jax.ShapeDtypeStruct((n_pad, emb_size), embedding.dtype)
    out_spec = pl.BlockSpec((tn, emb_size), lambda i, tok: (i, 0))

    if gather_mode == "vmem":
        kernel = functools.partial(_vmem_gather_kernel, tile_n=tn, scale=scale)
        out = pl.pallas_call(
            kernel,
            out_shape=out_shape,
            grid_spec=pltpu.PrefetchScalarGridSpec(
                num_scalar_prefetch=1,                           # token ids -> SMEM
                grid=grid,
                # Table block = full array, constant index_map -> stays resident.
                in_specs=[pl.BlockSpec((vocab, emb_size), lambda i, tok: (0, 0))],
                out_specs=out_spec,
            ),
            compiler_params=pltpu.CompilerParams(
                dimension_semantics=("parallel",),               # stateless steps
                vmem_limit_bytes=int(min(
                    2 * table_bytes + 4 * tn * emb_size * itemsize + (2 << 20),
                    64 << 20)),
            ),
        )(tok_flat, embedding)
    else:
        kernel = functools.partial(_dma_gather_kernel, tile_n=tn, scale=scale)
        out = pl.pallas_call(
            kernel,
            out_shape=out_shape,
            grid_spec=pltpu.PrefetchScalarGridSpec(
                num_scalar_prefetch=1,                           # token ids -> SMEM
                grid=grid,
                in_specs=[pl.BlockSpec(memory_space=pl.ANY)],    # table stays in HBM
                out_specs=out_spec,
                scratch_shapes=[
                    pltpu.VMEM((2, tn, emb_size), embedding.dtype),  # double buffer
                    pltpu.SemaphoreType.DMA((2,)),                   # one sem / slot
                ],
            ),
            compiler_params=pltpu.CompilerParams(
                # Cross-step prefetch carries state in scratch -> sequential axis.
                dimension_semantics=("arbitrary",),
                vmem_limit_bytes=int(min(
                    4 * tn * emb_size * itemsize + (4 << 20), 64 << 20)),
            ),
        )(tok_flat, embedding)

    if n_pad != n:
        out = out[:n]
    return out.reshape(*orig_shape, emb_size)


if __name__ == "__main__":
    # Small shapes consistent with the module: seq=8, batch=2, vocab=32, emb=32.
    vocab_size, emb_size, seq_len, batch = 32, 32, 8, 2

    key = jax.random.PRNGKey(0)
    k_emb, k_tok, k_emb2, k_tok2 = jax.random.split(key, 4)

    # nn.Embedding default init: weight ~ N(0, 1), shape (vocab_size, emb_size).
    table = jax.random.normal(k_emb, (vocab_size, emb_size), dtype=jnp.float32)
    tokens = jax.random.randint(k_tok, (seq_len, batch), 0, vocab_size,
                                dtype=jnp.int32)

    out = jax.block_until_ready(token_embedding(tokens, table))
    ref = jnp.take(table, tokens, axis=0) * math.sqrt(emb_size)
    assert out.shape == (seq_len, batch, emb_size), out.shape
    assert jnp.allclose(out, ref, atol=1e-5, rtol=1e-5), "vmem path mismatch"

    # Also exercise the HBM DMA row-gather path (aggregate wait + 1-tile-ahead
    # prefetch) at a slightly larger table with a 2-step grid.
    vocab2, emb2 = 512, 128
    table2 = jax.random.normal(k_emb2, (vocab2, emb2), dtype=jnp.float32)
    tokens2 = jax.random.randint(k_tok2, (seq_len, batch), 0, vocab2,
                                 dtype=jnp.int32)
    out2 = jax.block_until_ready(
        token_embedding(tokens2, table2, tile_n=8, gather_mode="dma"))
    ref2 = jnp.take(table2, tokens2, axis=0) * math.sqrt(emb2)
    assert out2.shape == (seq_len, batch, emb2), out2.shape
    assert jnp.allclose(out2, ref2, atol=1e-5, rtol=1e-5), "dma path mismatch"

    print("KERNEL_OK")
</pallas_src>

<mosaic_0001>
module attributes {stable_mosaic.version = 11 : i64} {
  func.func @_vmem_gather_kernel(%arg0: i32, %arg1: memref<16xi32, #tpu.memory_space<smem>>, %arg2: memref<32x32xf32, #tpu.memory_space<vmem>>, %arg3: memref<16x32xf32, #tpu.memory_space<vmem>>) attributes {dimension_semantics = [#tpu.dimension_semantics<parallel>], iteration_bounds = array<i64: 1>, scalar_prefetch = 1 : i64, scratch_operands = 0 : i64, tpu.core_type = #tpu.core_type<tc>, window_params = [{pipeline_mode = #tpu.pipeline_mode<synchronous>, transform_indices = @transform_0, window_bounds = array<i64: 32, 32>}, {transform_indices = @transform_1, window_bounds = array<i64: 16, 32>}]} {
    %c16_i32 = arith.constant 16 : i32
    %0 = arith.muli %arg0, %c16_i32 : i32
    %c0_i32 = arith.constant 0 : i32
    %1 = arith.addi %0, %c0_i32 : i32
    %2 = arith.index_cast %1 : i32 to index
    %3 = memref.load %arg1[%2] : memref<16xi32, #tpu.memory_space<smem>>
    %4 = arith.index_cast %3 : i32 to index
    %c0 = arith.constant 0 : index
    %5 = vector.load %arg2[%4, %c0] : memref<32x32xf32, #tpu.memory_space<vmem>>, vector<1x32xf32>
    %cst = arith.constant 5.65685415 : f32
    %6 = vector.broadcast %cst : f32 to vector<1x32xf32>
    %7 = arith.mulf %5, %6 : vector<1x32xf32>
    %8 = arith.index_cast %c0_i32 : i32 to index
    %c0_0 = arith.constant 0 : index
    %9 = vector.load %arg3[%8, %c0_0] : memref<16x32xf32, #tpu.memory_space<vmem>>, vector<1x32xf32>
    tpu.vector_store %arg3[%8, %c0_0], %7 {strides = array<i32>} : memref<16x32xf32, #tpu.memory_space<vmem>>, vector<1x32xf32>,
    %c1_i32 = arith.constant 1 : i32
    %10 = arith.addi %0, %c1_i32 : i32
    %11 = arith.index_cast %10 : i32 to index
    %12 = memref.load %arg1[%11] : memref<16xi32, #tpu.memory_space<smem>>
    %13 = arith.index_cast %12 : i32 to index
    %c0_1 = arith.constant 0 : index
    %14 = vector.load %arg2[%13, %c0_1] : memref<32x32xf32, #tpu.memory_space<vmem>>, vector<1x32xf32>
    %cst_2 = arith.constant 5.65685415 : f32
    %15 = vector.broadcast %cst_2 : f32 to vector<1x32xf32>
    %16 = arith.mulf %14, %15 : vector<1x32xf32>
    %17 = arith.index_cast %c1_i32 : i32 to index
    %c0_3 = arith.constant 0 : index
    %18 = vector.load %arg3[%17, %c0_3] : memref<16x32xf32, #tpu.memory_space<vmem>>, vector<1x32xf32>
    tpu.vector_store %arg3[%17, %c0_3], %16 {strides = array<i32>} : memref<16x32xf32, #tpu.memory_space<vmem>>, vector<1x32xf32>,
    %c2_i32 = arith.constant 2 : i32
    %19 = arith.addi %0, %c2_i32 : i32
    %20 = arith.index_cast %19 : i32 to index
    %21 = memref.load %arg1[%20] : memref<16xi32, #tpu.memory_space<smem>>
    %22 = arith.index_cast %21 : i32 to index
    %c0_4 = arith.constant 0 : index
    %23 = vector.load %arg2[%22, %c0_4] : memref<32x32xf32, #tpu.memory_space<vmem>>, vector<1x32xf32>
    %cst_5 = arith.constant 5.65685415 : f32
    %24 = vector.broadcast %cst_5 : f32 to vector<1x32xf32>
    %25 = arith.mulf %23, %24 : vector<1x32xf32>
    %26 = arith.index_cast %c2_i32 : i32 to index
    %c0_6 = arith.constant 0 : index
    %27 = vector.load %arg3[%26, %c0_6] : memref<16x32xf32, #tpu.memory_space<vmem>>, vector<1x32xf32>
    tpu.vector_store %arg3[%26, %c0_6], %25 {strides = array<i32>} : memref<16x32xf32, #tpu.memory_space<vmem>>, vector<1x32xf32>,
    %c3_i32 = arith.constant 3 : i32
    %28 = arith.addi %0, %c3_i32 : i32
    %29 = arith.index_cast %28 : i32 to index
    %30 = memref.load %arg1[%29] : memref<16xi32, #tpu.memory_space<smem>>
    %31 = arith.index_cast %30 : i32 to index
    %c0_7 = arith.constant 0 : index
    %32 = vector.load %arg2[%31, %c0_7] : memref<32x32xf32, #tpu.memory_space<vmem>>, vector<1x32xf32>
    %cst_8 = arith.constant 5.65685415 : f32
    %33 = vector.broadcast %cst_8 : f32 to vector<1x32xf32>
    %34 = arith.mulf %32, %33 : vector<1x32xf32>
    %35 = arith.index_cast %c3_i32 : i32 to index
    %c0_9 = arith.constant 0 : index
    %36 = vector.load %arg3[%35, %c0_9] : memref<16x32xf32, #tpu.memory_space<vmem>>, vector<1x32xf32>
    tpu.vector_store %arg3[%35, %c0_9], %34 {strides = array<i32>} : memref<16x32xf32, #tpu.memory_space<vmem>>, vector<1x32xf32>,
    %c4_i32 = arith.constant 4 : i32
    %37 = arith.addi %0, %c4_i32 : i32
    %38 = arith.index_cast %37 : i32 to index
    %39 = memref.load %arg1[%38] : memref<16xi32, #tpu.memory_space<smem>>
    %40 = arith.index_cast %39 : i32 to index
    %c0_10 = arith.constant 0 : index
    %41 = vector.load %arg2[%40, %c0_10] : memref<32x32xf32, #tpu.memory_space<vmem>>, vector<1x32xf32>
    %cst_11 = arith.constant 5.65685415 : f32
    %42 = vector.broadcast %cst_11 : f32 to vector<1x32xf32>
    %43 = arith.mulf %41, %42 : vector<1x32xf32>
    %44 = arith.index_cast %c4_i32 : i32 to index
    %c0_12 = arith.constant 0 : index
    %45 = vector.load %arg3[%44, %c0_12] : memref<16x32xf32, #tpu.memory_space<vmem>>, vector<1x32xf32>
    tpu.vector_store %arg3[%44, %c0_12], %43 {strides = array<i32>} : memref<16x32xf32, #tpu.memory_space<vmem>>, vector<1x32xf32>,
    %c5_i32 = arith.constant 5 : i32
    %46 = arith.addi %0, %c5_i32 : i32
    %47 = arith.index_cast %46 : i32 to index
    %48 = memref.load %arg1[%47] : memref<16xi32, #tpu.memory_space<smem>>
    %49 = arith.index_cast %48 : i32 to index
    %c0_13 = arith.constant 0 : index
    %50 = vector.load %arg2[%49, %c0_13] : memref<32x32xf32, #tpu.memory_space<vmem>>, vector<1x32xf32>
    %cst_14 = arith.constant 5.65685415 : f32
    %51 = vector.broadcast %cst_14 : f32 to vector<1x32xf32>
    %52 = arith.mulf %50, %51 : vector<1x32xf32>
    %53 = arith.index_cast %c5_i32 : i32 to index
    %c0_15 = arith.constant 0 : index
    %54 = vector.load %arg3[%53, %c0_15] : memref<16x32xf32, #tpu.memory_space<vmem>>, vector<1x32xf32>
    tpu.vector_store %arg3[%53, %c0_15], %52 {strides = array<i32>} : memref<16x32xf32, #tpu.memory_space<vmem>>, vector<1x32xf32>,
    %c6_i32 = arith.constant 6 : i32
    %55 = arith.addi %0, %c6_i32 : i32
    %56 = arith.index_cast %55 : i32 to index
    %57 = memref.load %arg1[%56] : memref<16xi32, #tpu.memory_space<smem>>
    %58 = arith.index_cast %57 : i32 to index
    %c0_16 = arith.constant 0 : index
    %59 = vector.load %arg2[%58, %c0_16] : memref<32x32xf32, #tpu.memory_space<vmem>>, vector<1x32xf32>
    %cst_17 = arith.constant 5.65685415 : f32
    %60 = vector.broadcast %cst_17 : f32 to vector<1x32xf32>
    %61 = arith.mulf %59, %60 : vector<1x32xf32>
    %62 = arith.index_cast %c6_i32 : i32 to index
    %c0_18 = arith.constant 0 : index
    %63 = vector.load %arg3[%62, %c0_18] : memref<16x32xf32, #tpu.memory_space<vmem>>, vector<1x32xf32>
    tpu.vector_store %arg3[%62, %c0_18], %61 {strides = array<i32>} : memref<16x32xf32, #tpu.memory_space<vmem>>, vector<1x32xf32>,
    %c7_i32 = arith.constant 7 : i32
    %64 = arith.addi %0, %c7_i32 : i32
    %65 = arith.index_cast %64 : i32 to index
    %66 = memref.load %arg1[%65] : memref<16xi32, #tpu.memory_space<smem>>
    %67 = arith.index_cast %66 : i32 to index
    %c0_19 = arith.constant 0 : index
    %68 = vector.load %arg2[%67, %c0_19] : memref<32x32xf32, #tpu.memory_space<vmem>>, vector<1x32xf32>
    %cst_20 = arith.constant 5.65685415 : f32
    %69 = vector.broadcast %cst_20 : f32 to vector<1x32xf32>
    %70 = arith.mulf %68, %69 : vector<1x32xf32>
    %71 = arith.index_cast %c7_i32 : i32 to index
    %c0_21 = arith.constant 0 : index
    %72 = vector.load %arg3[%71, %c0_21] : memref<16x32xf32, #tpu.memory_space<vmem>>, vector<1x32xf32>
    tpu.vector_store %arg3[%71, %c0_21], %70 {strides = array<i32>} : memref<16x32xf32, #tpu.memory_space<vmem>>, vector<1x32xf32>,
    %c8_i32 = arith.constant 8 : i32
    %73 = arith.addi %0, %c8_i32 : i32
    %74 = arith.index_cast %73 : i32 to index
    %75 = memref.load %arg1[%74] : memref<16xi32, #tpu.memory_space<smem>>
    %76 = arith.index_cast %75 : i32 to index
    %c0_22 = arith.constant 0 : index
    %77 = vector.load %arg2[%76, %c0_22] : memref<32x32xf32, #tpu.memory_space<vmem>>, vector<1x32xf32>
    %cst_23 = arith.constant 5.65685415 : f32
    %78 = vector.broadcast %cst_23 : f32 to vector<1x32xf32>
    %79 = arith.mulf %77, %78 : vector<1x32xf32>
    %80 = arith.index_cast %c8_i32 : i32 to index
    %c0_24 = arith.constant 0 : index
    %81 = vector.load %arg3[%80, %c0_24] : memref<16x32xf32, #tpu.memory_space<vmem>>, vector<1x32xf32>
    tpu.vector_store %arg3[%80, %c0_24], %79 {strides = array<i32>} : memref<16x32xf32, #tpu.memory_space<vmem>>, vector<1x32xf32>,
    %c9_i32 = arith.constant 9 : i32
    %82 = arith.addi %0, %c9_i32 : i32
    %83 = arith.index_cast %82 : i32 to index
    %84 = memref.load %arg1[%83] : memref<16xi32, #tpu.memory_space<smem>>
    %85 = arith.index_cast %84 : i32 to index
    %c0_25 = arith.constant 0 : index
    %86 = vector.load %arg2[%85, %c0_25] : memref<32x32xf32, #tpu.memory_space<vmem>>, vector<1x32xf32>
    %cst_26 = arith.constant 5.65685415 : f32
    %87 = vector.broadcast %cst_26 : f32 to vector<1x32xf32>
    %88 = arith.mulf %86, %87 : vector<1x32xf32>
    %89 = arith.index_cast %c9_i32 : i32 to index
    %c0_27 = arith.constant 0 : index
    %90 = vector.load %arg3[%89, %c0_27] : memref<16x32xf32, #tpu.memory_space<vmem>>, vector<1x32xf32>
    tpu.vector_store %arg3[%89, %c0_27], %88 {strides = array<i32>} : memref<16x32xf32, #tpu.memory_space<vmem>>, vector<1x32xf32>,
    %c10_i32 = arith.constant 10 : i32
    %91 = arith.addi %0, %c10_i32 : i32
    %92 = arith.index_cast %91 : i32 to index
    %93 = memref.load %arg1[%92] : memref<16xi32, #tpu.memory_space<smem>>
    %94 = arith.index_cast %93 : i32 to index
    %c0_28 = arith.constant 0 : index
    %95 = vector.load %arg2[%94, %c0_28] : memref<32x32xf32, #tpu.memory_space<vmem>>, vector<1x32xf32>
    %cst_29 = arith.constant 5.65685415 : f32
    %96 = vector.broadcast %cst_29 : f32 to vector<1x32xf32>
    %97 = arith.mulf %95, %96 : vector<1x32xf32>
    %98 = arith.index_cast %c10_i32 : i32 to index
    %c0_30 = arith.constant 0 : index
    %99 = vector.load %arg3[%98, %c0_30] : memref<16x32xf32, #tpu.memory_space<vmem>>, vector<1x32xf32>
    tpu.vector_store %arg3[%98, %c0_30], %97 {strides = array<i32>} : memref<16x32xf32, #tpu.memory_space<vmem>>, vector<1x32xf32>,
    %c11_i32 = arith.constant 11 : i32
    %100 = arith.addi %0, %c11_i32 : i32
    %101 = arith.index_cast %100 : i32 to index
    %102 = memref.load %arg1[%101] : memref<16xi32, #tpu.memory_space<smem>>
    %103 = arith.index_cast %102 : i32 to index
    %c0_31 = arith.constant 0 : index
    %104 = vector.load %arg2[%103, %c0_31] : memref<32x32xf32, #tpu.memory_space<vmem>>, vector<1x32xf32>
    %cst_32 = arith.constant 5.65685415 : f32
    %105 = vector.broadcast %cst_32 : f32 to vector<1x32xf32>
    %106 = arith.mulf %104, %105 : vector<1x32xf32>
    %107 = arith.index_cast %c11_i32 : i32 to index
    %c0_33 = arith.constant 0 : index
    %108 = vector.load %arg3[%107, %c0_33] : memref<16x32xf32, #tpu.memory_space<vmem>>, vector<1x32xf32>
    tpu.vector_store %arg3[%107, %c0_33], %106 {strides = array<i32>} : memref<16x32xf32, #tpu.memory_space<vmem>>, vector<1x32xf32>,
    %c12_i32 = arith.constant 12 : i32
    %109 = arith.addi %0, %c12_i32 : i32
    %110 = arith.index_cast %109 : i32 to index
    %111 = memref.load %arg1[%110] : memref<16xi32, #tpu.memory_space<smem>>
    %112 = arith.index_cast %111 : i32 to index
    %c0_34 = arith.constant 0 : index
    %113 = vector.load %arg2[%112, %c0_34] : memref<32x32xf32, #tpu.memory_space<vmem>>, vector<1x32xf32>
    %cst_35 = arith.constant 5.65685415 : f32
    %114 = vector.broadcast %cst_35 : f32 to vector<1x32xf32>
    %115 = arith.mulf %113, %114 : vector<1x32xf32>
    %116 = arith.index_cast %c12_i32 : i32 to index
    %c0_36 = arith.constant 0 : index
    %117 = vector.load %arg3[%116, %c0_36] : memref<16x32xf32, #tpu.memory_space<vmem>>, vector<1x32xf32>
    tpu.vector_store %arg3[%116, %c0_36], %115 {strides = array<i32>} : memref<16x32xf32, #tpu.memory_space<vmem>>, vector<1x32xf32>,
    %c13_i32 = arith.constant 13 : i32
    %118 = arith.addi %0, %c13_i32 : i32
    %119 = arith.index_cast %118 : i32 to index
    %120 = memref.load %arg1[%119] : memref<16xi32, #tpu.memory_space<smem>>
    %121 = arith.index_cast %120 : i32 to index
    %c0_37 = arith.constant 0 : index
    %122 = vector.load %arg2[%121, %c0_37] : memref<32x32xf32, #tpu.memory_space<vmem>>, vector<1x32xf32>
    %cst_38 = arith.constant 5.65685415 : f32
    %123 = vector.broadcast %cst_38 : f32 to vector<1x32xf32>
    %124 = arith.mulf %122, %123 : vector<1x32xf32>
    %125 = arith.index_cast %c13_i32 : i32 to index
    %c0_39 = arith.constant 0 : index
    %126 = vector.load %arg3[%125, %c0_39] : memref<16x32xf32, #tpu.memory_space<vmem>>, vector<1x32xf32>
    tpu.vector_store %arg3[%125, %c0_39], %124 {strides = array<i32>} : memref<16x32xf32, #tpu.memory_space<vmem>>, vector<1x32xf32>,
    %c14_i32 = arith.constant 14 : i32
    %127 = arith.addi %0, %c14_i32 : i32
    %128 = arith.index_cast %127 : i32 to index
    %129 = memref.load %arg1[%128] : memref<16xi32, #tpu.memory_space<smem>>
    %130 = arith.index_cast %129 : i32 to index
    %c0_40 = arith.constant 0 : index
    %131 = vector.load %arg2[%130, %c0_40] : memref<32x32xf32, #tpu.memory_space<vmem>>, vector<1x32xf32>
    %cst_41 = arith.constant 5.65685415 : f32
    %132 = vector.broadcast %cst_41 : f32 to vector<1x32xf32>
    %133 = arith.mulf %131, %132 : vector<1x32xf32>
    %134 = arith.index_cast %c14_i32 : i32 to index
    %c0_42 = arith.constant 0 : index
    %135 = vector.load %arg3[%134, %c0_42] : memref<16x32xf32, #tpu.memory_space<vmem>>, vector<1x32xf32>
    tpu.vector_store %arg3[%134, %c0_42], %133 {strides = array<i32>} : memref<16x32xf32, #tpu.memory_space<vmem>>, vector<1x32xf32>,
    %c15_i32 = arith.constant 15 : i32
    %136 = arith.addi %0, %c15_i32 : i32
    %137 = arith.index_cast %136 : i32 to index
    %138 = memref.load %arg1[%137] : memref<16xi32, #tpu.memory_space<smem>>
    %139 = arith.index_cast %138 : i32 to index
    %c0_43 = arith.constant 0 : index
    %140 = vector.load %arg2[%139, %c0_43] : memref<32x32xf32, #tpu.memory_space<vmem>>, vector<1x32xf32>
    %cst_44 = arith.constant 5.65685415 : f32
    %141 = vector.broadcast %cst_44 : f32 to vector<1x32xf32>
    %142 = arith.mulf %140, %141 : vector<1x32xf32>
    %143 = arith.index_cast %c15_i32 : i32 to index
    %c0_45 = arith.constant 0 : index
    %144 = vector.load %arg3[%143, %c0_45] : memref<16x32xf32, #tpu.memory_space<vmem>>, vector<1x32xf32>
    tpu.vector_store %arg3[%143, %c0_45], %142 {strides = array<i32>} : memref<16x32xf32, #tpu.memory_space<vmem>>, vector<1x32xf32>,
    %c16_i32_46 = arith.constant 16 : i32
    return
  }
  func.func @transform_0(%arg0: i32, %arg1: memref<16xi32, #tpu.memory_space<smem>>) -> (i32, i32) {
    %c0_i32 = arith.constant 0 : i32
    %c0_i32_0 = arith.constant 0 : i32
    %c0_i32_1 = arith.constant 0 : i32
    return %c0_i32, %c0_i32_0 : i32, i32
  }
  func.func @transform_1(%arg0: i32, %arg1: memref<16xi32, #tpu.memory_space<smem>>) -> (i32, i32) {
    %c0_i32 = arith.constant 0 : i32
    %c0_i32_0 = arith.constant 0 : i32
    return %arg0, %c0_i32 : i32, i32
  }
}

</mosaic_0001>

<llo_original>
// kernel: tpu_custom_call.1
$region0: #{tpu_custom_call.1}
  #allocation0 [shape = 'u32[]', space=smem, size = 0x4, offset = 0x4, fixed_abs, tag = 'smem constant byte address 0x4 - core index']
  #allocation1 [shape = 'u32[144,128]{1,0:T(1,128)}', space=vmem, size = 0x12000, scoped, tag = 'internal scratch']
  #allocation2 [shape = 's32[1]{0}', space=sflag, size = 0x4, scoped, tag = 'scoped memory for tpu_custom_call.1']
  #allocation3 [shape = 'u8[512]{0}', space=smem, size = 0x200, scoped, tag = 'prefetched SMEM operand 0']
  %s0 = inlined_call_operand.hbm [shape: s32[16], index: 0, kind: input, shape index: {}]
  %s1 = inlined_call_operand.hbm [shape: f32[32,32], index: 1, kind: input, shape index: {}]
  %s2 = inlined_call_operand.hbm [shape: f32[16,32], index: 2, kind: output, shape index: {}]
  %s3 = sld [smem:[#allocation0]]
  $region18: #{tpu_custom_call.1} parent=0
    _
  %s5 = ssub.s32 1, %s3
  %s6 = scalar_select 0, %s5, %s3
  %8 = dma.hbm_to_smem %s0, 16, [#allocation3], [#allocation2]
  %9 = dma.done [#allocation2], 16
  %10 = sfence
  $region1: #{tpu_custom_call.1} parent=0
    #allocation4 [shape = 'u8[16384]{0}', space=vmem, size = 0x4000, scoped, tag = 'input window, operand 1, single buffered']
    #allocation5 [shape = 's32[1]{0}', space=sflag, size = 0x4, scoped, tag = 'scoped memory for tpu_custom_call.1']
    #allocation6 [shape = 's32[1]{0}', space=sflag, size = 0x4, scoped, tag = 'scoped memory for tpu_custom_call.1']
    #allocation7 [shape = 'u8[8192]{0}', space=vmem, size = 0x2000, scoped, tag = 'output window, operand 0, single buffered']
    %11 = vsyncpa [#allocation5], 0
    %12 = vsyncpa [#allocation6], 0
    // Predicated region
    $region2: #{tpu_custom_call.1} parent=1 // pred_check
      _
    $region3: #{tpu_custom_call.1} parent=1 // pred_check_branch
      %14 = sbr.rel (0) target = $region5
    $region4: #{tpu_custom_call.1} parent=1 // pred_region
      %s16 = ssub.s32 512, 512
      %17 = vsyncadd [#allocation5], %s16
      %s18 = sshll.u32 [#allocation4], 4
      %s19 = int_to_ptr.vmem [resolvable:$true] %s18
      %24 = dma.hbm_to_vmem [thread:$0]  %s1, 512, %s19, [#allocation5], 128, 128, 8
    $region5: #{tpu_custom_call.1} parent=1 // pred_fallthru
      _
    // Predicated region
    $region6: #{tpu_custom_call.1} parent=1 // pred_check
      _
    $region7: #{tpu_custom_call.1} parent=1 // pred_check_branch
      %26 = sbr.rel (0) target = $region9
    $region8: #{tpu_custom_call.1} parent=1 // pred_region
      %27 = dma.done [#allocation5], 512
    $region9: #{tpu_custom_call.1} parent=1 // pred_fallthru
      _
    %s28 = smul.u32 0, 16
    %s29 = sld [smem:[#allocation3 + %s28]]
    %s30 = scalar_lea.vmem [#allocation4], %s29
    %v31 = vld [vmem:[%s30] sm:$0x1]
    %v32 = vmul.f32 %v31, 5.656854
    %vm33 = vcmask 253952
    %34 = vst.msk [vmem:[#allocation7] sm:$0x1] %vm33, %v32
    %s35 = sadd.s32 %s28, 1
    %s36 = sld [smem:[#allocation3 + %s35]]
    %s37 = scalar_lea.vmem [#allocation4], %s36
    %v38 = vld [vmem:[%s37] sm:$0x1]
    %v39 = vmul.f32 %v38, 5.656854
    %40 = vst.msk [vmem:[#allocation7 + $0x1] sm:$0x1] %vm33, %v39
    %s41 = sadd.s32 %s28, 2
    %s42 = sld [smem:[#allocation3 + %s41]]
    %s43 = scalar_lea.vmem [#allocation4], %s42
    %v44 = vld [vmem:[%s43] sm:$0x1]
    %v45 = vmul.f32 %v44, 5.656854
    %46 = vst.msk [vmem:[#allocation7 + $0x2] sm:$0x1] %vm33, %v45
    %s47 = sadd.s32 %s28, 3
    %s48 = sld [smem:[#allocation3 + %s47]]
    %s49 = scalar_lea.vmem [#allocation4], %s48
    %v50 = vld [vmem:[%s49] sm:$0x1]
    %v51 = vmul.f32 %v50, 5.656854
    %52 = vst.msk [vmem:[#allocation7 + $0x3] sm:$0x1] %vm33, %v51
    %s53 = sadd.s32 %s28, 4
    %s54 = sld [smem:[#allocation3 + %s53]]
    %s55 = scalar_lea.vmem [#allocation4], %s54
    %v56 = vld [vmem:[%s55] sm:$0x1]
    %v57 = vmul.f32 %v56, 5.656854
    %58 = vst.msk [vmem:[#allocation7 + $0x4] sm:$0x1] %vm33, %v57
    %s59 = sadd.s32 %s28, 5
    %s60 = sld [smem:[#allocation3 + %s59]]
    %s61 = scalar_lea.vmem [#allocation4], %s60
    %v62 = vld [vmem:[%s61] sm:$0x1]
    %v63 = vmul.f32 %v62, 5.656854
    %64 = vst.msk [vmem:[#allocation7 + $0x5] sm:$0x1] %vm33, %v63
    %s65 = sadd.s32 %s28, 6
    %s66 = sld [smem:[#allocation3 + %s65]]
    %s67 = scalar_lea.vmem [#allocation4], %s66
    %v68 = vld [vmem:[%s67] sm:$0x1]
    %v69 = vmul.f32 %v68, 5.656854
    %70 = vst.msk [vmem:[#allocation7 + $0x6] sm:$0x1] %vm33, %v69
    %s71 = sadd.s32 %s28, 7
    %s72 = sld [smem:[#allocation3 + %s71]]
    %s73 = scalar_lea.vmem [#allocation4], %s72
    %v74 = vld [vmem:[%s73] sm:$0x1]
    %v75 = vmul.f32 %v74, 5.656854
    %76 = vst.msk [vmem:[#allocation7 + $0x7] sm:$0x1] %vm33, %v75
    %s77 = sadd.s32 %s28, 8
    %s78 = sld [smem:[#allocation3 + %s77]]
    %s79 = scalar_lea.vmem [#allocation4], %s78
    %v80 = vld [vmem:[%s79] sm:$0x1]
    %v81 = vmul.f32 %v80, 5.656854
    %82 = vst.msk [vmem:[#allocation7 + $0x8] sm:$0x1] %vm33, %v81
    %s83 = sadd.s32 %s28, 9
    %s84 = sld [smem:[#allocation3 + %s83]]
    %s85 = scalar_lea.vmem [#allocation4], %s84
    %v86 = vld [vmem:[%s85] sm:$0x1]
    %v87 = vmul.f32 %v86, 5.656854
    %88 = vst.msk [vmem:[#allocation7 + $0x9] sm:$0x1] %vm33, %v87
    %s89 = sadd.s32 %s28, 10
    %s90 = sld [smem:[#allocation3 + %s89]]
    %s91 = scalar_lea.vmem [#allocation4], %s90
    %v92 = vld [vmem:[%s91] sm:$0x1]
    %v93 = vmul.f32 %v92, 5.656854
    %94 = vst.msk [vmem:[#allocation7 + $0xa] sm:$0x1] %vm33, %v93
    %s95 = sadd.s32 %s28, 11
    %s96 = sld [smem:[#allocation3 + %s95]]
    %s97 = scalar_lea.vmem [#allocation4], %s96
    %v98 = vld [vmem:[%s97] sm:$0x1]
    %v99 = vmul.f32 %v98, 5.656854
    %100 = vst.msk [vmem:[#allocation7 + $0xb] sm:$0x1] %vm33, %v99
    %s101 = sadd.s32 %s28, 12
    %s102 = sld [smem:[#allocation3 + %s101]]
    %s103 = scalar_lea.vmem [#allocation4], %s102
    %v104 = vld [vmem:[%s103] sm:$0x1]
    %v105 = vmul.f32 %v104, 5.656854
    %106 = vst.msk [vmem:[#allocation7 + $0xc] sm:$0x1] %vm33, %v105
    %s107 = sadd.s32 %s28, 13
    %s108 = sld [smem:[#allocation3 + %s107]]
    %s109 = scalar_lea.vmem [#allocation4], %s108
    %v110 = vld [vmem:[%s109] sm:$0x1]
    %v111 = vmul.f32 %v110, 5.656854
    %112 = vst.msk [vmem:[#allocation7 + $0xd] sm:$0x1] %vm33, %v111
    %s113 = sadd.s32 %s28, 14
    %s114 = sld [smem:[#allocation3 + %s113]]
    %s115 = scalar_lea.vmem [#allocation4], %s114
    %v116 = vld [vmem:[%s115] sm:$0x1]
    %v117 = vmul.f32 %v116, 5.656854
    %118 = vst.msk [vmem:[#allocation7 + $0xe] sm:$0x1] %vm33, %v117
    %s119 = sadd.s32 %s28, 15
    %s120 = sld [smem:[#allocation3 + %s119]]
    %s121 = scalar_lea.vmem [#allocation4], %s120
    %v122 = vld [vmem:[%s121] sm:$0x1]
    %v123 = vmul.f32 %v122, 5.656854
    %124 = vst.msk [vmem:[#allocation7 + $0xf] sm:$0x1] %vm33, %v123
    // Predicated region
    $region10: #{tpu_custom_call.1} parent=1 // pred_check
      _
    $region11: #{tpu_custom_call.1} parent=1 // pred_check_branch
      %126 = sbr.rel (0) target = $region13
    $region12: #{tpu_custom_call.1} parent=1 // pred_region
      %s128 = ssub.s32 256, 256
      %129 = vsyncadd [#allocation6], %s128
      %s130 = sshll.u32 [#allocation7], 4
      %s131 = int_to_ptr.vmem [resolvable:$true] %s130
      %136 = dma.vmem_to_hbm [thread:$0]  %s131, 256, %s2, [#allocation6], 128, 128, 8
    $region13: #{tpu_custom_call.1} parent=1 // pred_fallthru
      _
    // Predicated region
    $region14: #{tpu_custom_call.1} parent=1 // pred_check
      _
    $region15: #{tpu_custom_call.1} parent=1 // pred_check_branch
      %138 = sbr.rel (0) target = $region17
    $region16: #{tpu_custom_call.1} parent=1 // pred_region
      %139 = dma.done [#allocation6], 256
    $region17: #{tpu_custom_call.1} parent=1 // pred_fallthru
      _
    %140 = vsyncpa [#allocation5], 1
    %141 = vsyncpa [#allocation6], 1

</llo_original>
